<compile_context>
chip_gen: v7x
topology: tpu7x:2x2x1
jax: 0.10.0
libtpu: 0.0.40
codegen_flags: <defaults>
</compile_context>

<pallas_src>
import functools

import jax
import jax.numpy as jnp
from jax.experimental import pallas as pl
from jax.experimental.pallas import tpu as pltpu


def _fold_axially_identity_kernel(x_ref, o_ref):
    """Whole-block streaming copy.

    fn == identity, so fold ∘ fn ∘ unfold is a pure copy: the body is one dense
    vld/vst per block, fully hidden under the HBM DMA pipeline.
    """
    # TODO(synk): when a concrete `fn` is wired in, put axial_dim on the grid
    # (grid=(b, ax, n//tn)) so `fn` receives a layout-clean (tn, d) folded-sequence
    # slab, and thread `input_mask` in via scalar prefetch instead of the wrapper.
    o_ref[...] = x_ref[...]


def _pick_seq_tile(n, row_bytes, target_bytes):
    """Largest sublane-aligned divisor of `n` whose block is <= ~target_bytes.

    Keeps each (1, tn, ax*d) block around 1-4 MiB so in+out double-buffering fits
    every generation's scoped-VMEM default, while still giving the grid multiple
    steps per batch row for pipelining / core sharding.
    """
    if n * row_bytes <= target_bytes:
        return n
    budget = max(1, target_bytes // row_bytes)
    for tn in range(min(n - 1, int(budget)), 0, -1):
        if n % tn == 0 and tn % 8 == 0:          # divides n, sublane aligned
            return tn
    return n  # no aligned divisor fits the budget: fall back to the full folded length


@functools.partial(
    jax.jit, static_argnames=("axial_dim", "seq_tile", "block_bytes_target")
)
def fold_axially(x, input_mask=None, *, axial_dim, seq_tile=None,
                 block_bytes_target=2 << 20):
    """x: (b, t, d) with t % axial_dim == 0.  Returns (b, t, d)."""
    b, t, d = x.shape
    ax = axial_dim
    assert t % ax == 0, "sequence length must be divisible by axial_dim"
    n = t // ax                                   # folded sequence length
    fused = ax * d                                # lane dim of the kernel blocks
    itemsize = jnp.dtype(x.dtype).itemsize
    row_bytes = fused * itemsize

    if input_mask is not None:
        # The mask only parameterises the wrapped `fn`, which is identity here, so
        # it is not consumed by the kernel (and is never re-materialised in HBM).
        # TODO(synk): forward the folded mask to `fn` (scalar prefetch / SMEM) once
        # a concrete fn is wired in.
        pass

    tn = _pick_seq_tile(n, row_bytes, block_bytes_target) if seq_tile is None else seq_tile
    assert n % tn == 0, "seq_tile must divide t // axial_dim"

    # Free reshape (no data movement): (b, t, d) -> (b, n, ax*d).  Minor block dims
    # become (tn, ax*d): no sublane padding from a short ax axis, lane-dense output.
    x3 = x.reshape(b, n, fused)

    out3 = pl.pallas_call(
        _fold_axially_identity_kernel,
        out_shape=jax.ShapeDtypeStruct((b, n, fused), x.dtype),
        grid_spec=pltpu.PrefetchScalarGridSpec(
            num_scalar_prefetch=0,
            grid=(b, n // tn),
            # Last block dim equals the full array dim -> always a legal layout.
            in_specs=[pl.BlockSpec((1, tn, fused), lambda i, j: (i, j, 0))],
            out_specs=pl.BlockSpec((1, tn, fused), lambda i, j: (i, j, 0)),
        ),
        compiler_params=pltpu.CompilerParams(
            # Disjoint output blocks per grid point: both axes shard across cores.
            dimension_semantics=("parallel", "parallel"),
        ),
        cost_estimate=pl.CostEstimate(
            flops=0,
            transcendentals=0,
            bytes_accessed=2 * b * t * d * itemsize,   # read x + write out
        ),
    )(x3)

    return out3.reshape(b, t, d)


def _reference(x, ax):
    """Pure-JAX mirror of the PyTorch forward (fn = identity)."""
    b, t, d = x.shape
    n = t // ax
    f = x.reshape(b, n, ax, d).transpose(0, 2, 1, 3).reshape(b * ax, n, d)
    f = f  # fn = identity
    return f.reshape(b, ax, n, d).transpose(0, 2, 1, 3).reshape(b, t, d)


if __name__ == "__main__":
    key = jax.random.PRNGKey(0)
    k1, k2, k3 = jax.random.split(key, 3)

    # Config 1: lane-dense fused minor dim (ax*d = 512, a multiple of 128).
    b, t, d, ax = 2, 16, 128, 4
    x = jax.random.normal(k1, (b, t, d), dtype=jnp.float32)
    mask = jnp.ones((b, t), dtype=jnp.bool_)
    out = jax.block_until_ready(fold_axially(x, mask, axial_dim=ax))
    assert out.shape == (b, t, d)
    assert jnp.array_equal(out, _reference(x, ax)), "mismatch vs reference (config 1)"

    # Config 2: small hidden dim (d=32, seq=8) to exercise the general path.
    b2, t2, d2, ax2 = 2, 8, 32, 2
    x2 = jax.random.normal(k2, (b2, t2, d2), dtype=jnp.float32)
    out2 = jax.block_until_ready(fold_axially(x2, axial_dim=ax2))
    assert jnp.array_equal(out2, _reference(x2, ax2)), "mismatch vs reference (config 2)"

    # Config 3: force the multi-step tiled path (tiny block-byte target -> tn=8,
    # grid=(2, 2)) to exercise the auto tile picker and pipelining.
    b3, t3, d3, ax3 = 2, 64, 128, 4
    x3 = jax.random.normal(k3, (b3, t3, d3), dtype=jnp.float32)
    out3 = jax.block_until_ready(
        fold_axially(x3, axial_dim=ax3, block_bytes_target=16 * 1024))
    assert jnp.array_equal(out3, _reference(x3, ax3)), "mismatch vs reference (config 3)"

    print("KERNEL_OK")
</pallas_src>

<mosaic_0001>
module attributes {stable_mosaic.version = 11 : i64} {
  func.func @_fold_axially_identity_kernel(%arg0: i32, %arg1: i32, %arg2: memref<1x4x512xf32, #tpu.memory_space<vmem>>, %arg3: memref<1x4x512xf32, #tpu.memory_space<vmem>>) attributes {dimension_semantics = [#tpu.dimension_semantics<parallel>, #tpu.dimension_semantics<parallel>], iteration_bounds = array<i64: 2, 1>, scalar_prefetch = 0 : i64, scratch_operands = 0 : i64, tpu.core_type = #tpu.core_type<tc>, window_params = [{transform_indices = @transform_0, window_bounds = array<i64: 1, 4, 512>}, {transform_indices = @transform_1, window_bounds = array<i64: 1, 4, 512>}]} {
    %c0 = arith.constant 0 : index
    %c0_0 = arith.constant 0 : index
    %c0_1 = arith.constant 0 : index
    %0 = vector.load %arg2[%c0, %c0_0, %c0_1] : memref<1x4x512xf32, #tpu.memory_space<vmem>>, vector<1x4x512xf32>
    %c0_2 = arith.constant 0 : index
    %c0_3 = arith.constant 0 : index
    %c0_4 = arith.constant 0 : index
    %1 = vector.load %arg3[%c0_2, %c0_3, %c0_4] : memref<1x4x512xf32, #tpu.memory_space<vmem>>, vector<1x4x512xf32>
    tpu.vector_store %arg3[%c0_2, %c0_3, %c0_4], %0 {strides = array<i32>} : memref<1x4x512xf32, #tpu.memory_space<vmem>>, vector<1x4x512xf32>,
    return
  }
  func.func @transform_0(%arg0: i32, %arg1: i32) -> (i32, i32, i32) {
    %c0_i32 = arith.constant 0 : i32
    %c0_i32_0 = arith.constant 0 : i32
    return %arg0, %arg1, %c0_i32 : i32, i32, i32
  }
  func.func @transform_1(%arg0: i32, %arg1: i32) -> (i32, i32, i32) {
    %c0_i32 = arith.constant 0 : i32
    %c0_i32_0 = arith.constant 0 : i32
    return %arg0, %arg1, %c0_i32 : i32, i32, i32
  }
}

</mosaic_0001>

<llo_original>
// kernel: fold_axially.1
$region0: #{fold_axially.1}
  #allocation0 [shape = 'u32[]', space=smem, size = 0x4, offset = 0x4, fixed_abs, tag = 'smem constant byte address 0x4 - core index']
  #allocation1 [shape = 'u32[144,128]{1,0:T(1,128)}', space=vmem, size = 0x12000, scoped, tag = 'internal scratch']
  %s0 = inlined_call_operand.vmem [shape: f32[2,4,512], index: 0, kind: input, shape index: {}]
  %s1 = inlined_call_operand.vmem [shape: f32[2,4,512], index: 1, kind: output, shape index: {}]
  %s2 = sld [smem:[#allocation0]]
  $region37: #{fold_axially.1} parent=0
    _
  %s4 = ssub.s32 1, %s2
  %s5 = scalar_select 0, %s4, %s2
  loop: start=0, step=1, limit=4
  $region2: #{fold_axially.1} parent=0 // loop_pre_header
    _
  $region3: #{fold_axially.1} parent=0 // loop_header
    %s7 = sphi 0, %s11
    %p8 = scmp.ge.s32.totalorder %s7, 4
    %s14 = sphi 0, %s26
    %s15 = sphi 0, %s22
    %s16 = sphi 0, %s14
    %s17 = sphi 0, %s15
    %s18 = sphi 0, %s16
    %s19 = sphi 0, %s17
    %s31 = sphi 0, %s33
    %s34 = sphi 0, %s31
    %s35 = sphi 0, %s34
    %s51 = sphi 0, %s35
    %s59 = sphi 0, %s61
    %s62 = sphi 0, %s59
    %s63 = sphi 0, %s62
    %s79 = sphi 0, %s63
  $region4: #{fold_axially.1} parent=0 // loop_header_branch
    %10 = sbr.rel (%p8) target = $region8
  $region5: #{fold_axially.1} parent=0 // loop_body
    %s12 = ssub.s32 %s7, 1
    %s13 = ssub.s32 %s7, 2
    %s20 = sadd.s32 1, %s15
    %p21 = scmp.ge.s32.totalorder %s20, 1
    %s22 = scalar_select %p21, 0, %s20
    %s23 = sadd.s32 1, %s14
    %s24 = scalar_select %p21, %s23, %s14
    %p25 = scmp.ge.s32.totalorder %s24, 2
    %s26 = scalar_select %p25, 0, %s24
    %s27 = ssub.s32 %s14, %s26
    %s28 = ssub.s32 %s15, %s22
    %s29 = sor.u32 %s27, %s28
    %p30 = scmp.eq.s32.totalorder %s29, 0
    %s32 = sadd.s32 %s31, 1
    %s33 = scalar_select %p30, %s31, %s32
    %p36 = pneg %p30
    %p37 = scmp.eq.s32.totalorder %s7, 1
    %p38 = por %p36, %p37
    %p39 = scmp.ne.s32.totalorder %s31, %s34
    %p40 = scmp.eq.s32.totalorder %s7, 0
    %p41 = por %p39, %p40
    %p42 = scmp.ne.s32.totalorder %s31, %s34
    %p43 = scmp.eq.s32.totalorder %s12, 1
    %p44 = por %p42, %p43
    %p45 = scmp.ne.s32.totalorder %s34, %s35
    %p46 = scmp.eq.s32.totalorder %s12, 0
    %p47 = por %p45, %p46
    %p48 = scmp.ne.s32.totalorder %s34, %s35
    %p49 = scmp.eq.s32.totalorder %s13, 1
    %p50 = por %p48, %p49
    %p52 = scmp.ne.s32.totalorder %s35, %s51
    %p53 = scmp.eq.s32.totalorder %s13, 0
    %p54 = por %p52, %p53
    %s55 = ssub.s32 %s14, %s26
    %s56 = ssub.s32 %s15, %s22
    %s57 = sor.u32 %s55, %s56
    %p58 = scmp.eq.s32.totalorder %s57, 0
    %s60 = sadd.s32 %s59, 1
    %s61 = scalar_select %p58, %s59, %s60
    %p64 = pneg %p58
    %p65 = scmp.eq.s32.totalorder %s7, 1
    %p66 = por %p64, %p65
    %p67 = scmp.ne.s32.totalorder %s59, %s62
    %p68 = scmp.eq.s32.totalorder %s7, 0
    %p69 = por %p67, %p68
    %p70 = scmp.ne.s32.totalorder %s59, %s62
    %p71 = scmp.eq.s32.totalorder %s12, 1
    %p72 = por %p70, %p71
    %p73 = scmp.ne.s32.totalorder %s62, %s63
    %p74 = scmp.eq.s32.totalorder %s12, 0
    %p75 = por %p73, %p74
    %p76 = scmp.ne.s32.totalorder %s62, %s63
    %p77 = scmp.eq.s32.totalorder %s13, 1
    %p78 = por %p76, %p77
    %p80 = scmp.ne.s32.totalorder %s63, %s79
    %p81 = scmp.eq.s32.totalorder %s13, 0
    %p82 = por %p80, %p81
    %p83 = scmp.le.s32.totalorder 1, %s7
    %p84 = scmp.lt.s32.totalorder %s7, 3
    %p85 = pnand %p83, %p84
    %p86 = pneg %p85
    // Predicated region
    $region9: #{fold_axially.1} parent=5 // pred_check
      _
    $region10: #{fold_axially.1} parent=5 // pred_check_branch
      %88 = sbr.rel (%p85) target = $region12
    $region11: #{fold_axially.1} parent=5 // pred_region
      %s89 = ssub.s32 %s7, 1
    $region12: #{fold_axially.1} parent=5 // pred_fallthru
      _
    %p90 = scmp.lt.s32.totalorder %s7, 2
    // Predicated region
    $region13: #{fold_axially.1} parent=5 // pred_check
      %p91 = pneg %p90
    $region14: #{fold_axially.1} parent=5 // pred_check_branch
      %93 = sbr.rel (%p91) target = $region16
    $region15: #{fold_axially.1} parent=5 // pred_region
      // Predicated region
      $region17: #{fold_axially.1} parent=15 // pred_check
        %p94 = pneg %p41
      $region18: #{fold_axially.1} parent=15 // pred_check_branch
        %96 = sbr.rel (%p94) target = $region20
      $region19: #{fold_axially.1} parent=15 // pred_region
        %p97 = scmp.lt.s32.totalorder %s14, 1
        %s98 = scalar_select %p97, %s14, 1
        %p99 = scmp.lt.s32.totalorder %s15, 0
        %s100 = scalar_select %p99, %s15, 0
        %s101 = smul.addr %s100, 4
        %s102 = smul.addr %s98, 4
        %s103 = sadd.s32 %s101, %s102
        %s104 = smul.addr %s103, 4
        %s105 = scalar_lea.vmem %s0, %s104
      $region20: #{fold_axially.1} parent=15 // pred_fallthru
        _
    $region16: #{fold_axially.1} parent=5 // pred_fallthru
      _
    %p106 = scmp.le.s32.totalorder 1, %s7
    %p107 = scmp.lt.s32.totalorder %s7, 3
    %p108 = pnand %p106, %p107
    %p109 = pneg %p108
    // Predicated region
    $region21: #{fold_axially.1} parent=5 // pred_check
      _
    $region22: #{fold_axially.1} parent=5 // pred_check_branch
      %111 = sbr.rel (%p108) target = $region24
    $region23: #{fold_axially.1} parent=5 // pred_region
      %s112 = ssub.s32 %s7, 1
      %p113 = scmp.lt.s32.totalorder %s16, 1
      %s114 = scalar_select %p113, %s16, 1
      %p115 = scmp.lt.s32.totalorder %s17, 0
      %s116 = scalar_select %p115, %s17, 0
      %s117 = smul.addr %s116, 4
      %s118 = smul.addr %s114, 4
      %s119 = sadd.s32 %s117, %s118
      %s120 = smul.addr %s119, 4
      %s121 = scalar_lea.vmem %s0, %s120
      %p122 = pneg %p47
      %p123 = pneg %p44
      %p124 = pneg %p75
      %p125 = pneg %p72
      %p126 = scmp.lt.s32.totalorder %s16, 1
      %s127 = scalar_select %p126, %s16, 1
      %p128 = scmp.lt.s32.totalorder %s17, 0
      %s129 = scalar_select %p128, %s17, 0
      %s130 = smul.addr %s129, 4
      %s131 = smul.addr %s127, 4
      %s132 = sadd.s32 %s130, %s131
      %s133 = smul.addr %s132, 4
      %s134 = scalar_lea.vmem %s1, %s133
      %p135 = scmp.lt.s32.totalorder %s16, 1
      %s136 = scalar_select %p135, %s16, 1
      %p137 = scmp.lt.s32.totalorder %s17, 0
      %s138 = scalar_select %p137, %s17, 0
      %s139 = smul.addr %s138, 4
      %s140 = smul.addr %s136, 4
      %s141 = sadd.s32 %s139, %s140
      %s142 = smul.addr %s141, 4
      %s143 = scalar_lea.vmem %s0, %s142
      %p144 = scmp.lt.s32.totalorder %s16, 1
      %s145 = scalar_select %p144, %s16, 1
      %p146 = scmp.lt.s32.totalorder %s17, 0
      %s147 = scalar_select %p146, %s17, 0
      %s148 = smul.addr %s147, 4
      %s149 = smul.addr %s145, 4
      %s150 = sadd.s32 %s148, %s149
      %s151 = smul.addr %s150, 4
      %s152 = scalar_lea.vmem %s1, %s151
      %v153 = vld [vmem:[%s143] sm:$0xff]
      %v154 = vld [vmem:[%s143 + $0x8] sm:$0xff]
      %155 = vst [vmem:[%s152] sm:$0xff] %v153
      %156 = vst [vmem:[%s152 + $0x8] sm:$0xff] %v154
      %p157 = scmp.lt.s32.totalorder %s16, 1
      %s158 = scalar_select %p157, %s16, 1
      %p159 = scmp.lt.s32.totalorder %s17, 0
      %s160 = scalar_select %p159, %s17, 0
      %s161 = smul.addr %s160, 4
      %s162 = smul.addr %s158, 4
      %s163 = sadd.s32 %s161, %s162
      %s164 = smul.addr %s163, 4
      %s165 = scalar_lea.vmem %s1, %s164
      // Predicated region
      $region25: #{fold_axially.1} parent=23 // pred_check
        %p166 = pneg %p72
      $region26: #{fold_axially.1} parent=23 // pred_check_branch
        %168 = sbr.rel (%p166) target = $region28
      $region27: #{fold_axially.1} parent=23 // pred_region
        _
      $region28: #{fold_axially.1} parent=23 // pred_fallthru
        _
    $region24: #{fold_axially.1} parent=5 // pred_fallthru
      _
    %p169 = scmp.le.s32.totalorder 2, %s7
    // Predicated region
    $region29: #{fold_axially.1} parent=5 // pred_check
      %p170 = pneg %p169
    $region30: #{fold_axially.1} parent=5 // pred_check_branch
      %172 = sbr.rel (%p170) target = $region32
    $region31: #{fold_axially.1} parent=5 // pred_region
      %s173 = ssub.s32 %s7, 2
      // Predicated region
      $region33: #{fold_axially.1} parent=31 // pred_check
        %p174 = pneg %p78
      $region34: #{fold_axially.1} parent=31 // pred_check_branch
        %176 = sbr.rel (%p174) target = $region36
      $region35: #{fold_axially.1} parent=31 // pred_region
        %p177 = scmp.lt.s32.totalorder %s18, 1
        %s178 = scalar_select %p177, %s18, 1
        %p179 = scmp.lt.s32.totalorder %s19, 0
        %s180 = scalar_select %p179, %s19, 0
        %s181 = smul.addr %s180, 4
        %s182 = smul.addr %s178, 4
        %s183 = sadd.s32 %s181, %s182
        %s184 = smul.addr %s183, 4
        %s185 = scalar_lea.vmem %s1, %s184
      $region36: #{fold_axially.1} parent=31 // pred_fallthru
        _
    $region32: #{fold_axially.1} parent=5 // pred_fallthru
      _
  $region6: #{fold_axially.1} parent=0 // loop_footer
    %s11 = sadd.s32 1, %s7
  $region7: #{fold_axially.1} parent=0 // loop_footer_branch
    %6 = sbr.rel target = $region3
  $region8: #{fold_axially.1} parent=0 // loop_exit
    _

</llo_original>
